<compile_context>
chip_gen: v6e
topology: v6e:2x2x1
jax: 0.10.0
libtpu: 0.0.40
codegen_flags: <defaults>
</compile_context>

<pallas_src>
import jax
import jax.numpy as jnp
from jax.experimental import pallas as pl
from jax.experimental.pallas import tpu as pltpu


def _dc_kernel(x_ref, w_ref, b_ref, o_ref, acc_ref):
    # x_ref  : (tc, H, W)      f32 VMEM  — one channel tile of one batch element
    # w_ref  : (C*9,)          f32 SMEM  — flattened (C,3,3) weights, idx = c*9 + i*3 + j
    # b_ref  : (1,)            f32 SMEM  — bias
    # o_ref  : (H, W)          f32 VMEM  — output tile (same block for every ci)
    # acc_ref: (9, H+2, W+2)   f32 VMEM scratch — zero-bordered per-tap accumulators
    tc, H, W = x_ref.shape
    ci = pl.program_id(1)
    n_ci = pl.num_programs(1)

    @pl.when(ci == 0)
    def _init():
        acc_ref[...] = jnp.zeros_like(acc_ref)

    c0 = ci * tc  # global channel offset of this channel tile

    def channel_body(c, taps):
        xc = x_ref[c]                       # (H, W): one vector load per channel
        wbase = (c0 + c) * 9
        return tuple(taps[t] + xc * w_ref[wbase + t] for t in range(9))

    taps0 = tuple(jnp.zeros((H, W), jnp.float32) for _ in range(9))
    taps = jax.lax.fori_loop(0, tc, channel_body, taps0)

    # Flush this channel tile's contribution into the zero-bordered scratch
    # (border rows/cols stay zero == the conv's zero padding).
    for t in range(9):
        acc_ref[t, 1:H + 1, 1:W + 1] += taps[t]

    @pl.when(ci == n_ci - 1)
    def _finalize():
        out = jnp.full((H, W), b_ref[0], dtype=jnp.float32)
        for i in range(3):
            for j in range(3):
                # out(h, w) += tap_{i,j}(h + i - 1, w + j - 1); zero border = padding.
                out = out + acc_ref[3 * i + j, i:i + H, j:j + W]
        o_ref[...] = out


def _pick_channel_tile(C, H, W, target_bytes=8 * 1024 * 1024):
    """Largest divisor of C whose (tc, H, W) f32 input block stays under ~target_bytes."""
    max_tc = max(1, target_bytes // (H * W * 4))
    tc = min(C, max_tc)
    while C % tc:
        tc -= 1
    return tc


def dc_forward(x, w, b, *, channel_tile=None):
    """x: (N, C, H, W), w: (1, C, 3, 3), b: (1,)  ->  (N, 1, H, W) float32."""
    N, C, H, W = x.shape
    assert w.shape == (1, C, 3, 3) and b.shape == (1,)
    x = x.astype(jnp.float32)
    w_flat = w[0].astype(jnp.float32).reshape(C * 9)   # index = c*9 + i*3 + j
    b = b.astype(jnp.float32)

    tc = channel_tile if channel_tile is not None else _pick_channel_tile(C, H, W)
    assert C % tc == 0
    n_ci = C // tc

    # TODO(synk): for very large feature maps additionally tile H with a 1-row halo;
    # channel tiling alone already bounds per-step VMEM for typical shapes.
    return pl.pallas_call(
        _dc_kernel,
        out_shape=jax.ShapeDtypeStruct((N, 1, H, W), jnp.float32),
        grid=(N, n_ci),
        in_specs=[
            # one (tc, H, W) channel tile per grid step; batch dim squeezed out
            pl.BlockSpec((None, tc, H, W), lambda n, ci: (n, ci, 0, 0)),
            pl.BlockSpec(memory_space=pltpu.MemorySpace.SMEM),   # weights
            pl.BlockSpec(memory_space=pltpu.MemorySpace.SMEM),   # bias
        ],
        # same output block for every ci -> stays resident; written at the last ci
        out_specs=pl.BlockSpec((None, None, H, W), lambda n, ci: (n, 0, 0, 0)),
        scratch_shapes=[pltpu.VMEM((9, H + 2, W + 2), jnp.float32)],
        compiler_params=pltpu.CompilerParams(
            dimension_semantics=("parallel", "arbitrary"),
            vmem_limit_bytes=48 * 1024 * 1024,
        ),
    )(x, w_flat, b)


def dc_reference(x, w, b):
    # plain-JAX reference: equivalent full conv (C -> 1, 3x3, pad 1) + bias
    out = jax.lax.conv_general_dilated(
        x.astype(jnp.float32), w.astype(jnp.float32),
        window_strides=(1, 1), padding=((1, 1), (1, 1)),
        dimension_numbers=("NCHW", "OIHW", "NCHW"))
    return out + b.reshape(1, 1, 1, 1)


if __name__ == "__main__":
    # small shapes: batch=2, channels=4, spatial=16
    N, C, H, W = 2, 4, 16, 16
    key = jax.random.PRNGKey(0)
    kx, kw, kb = jax.random.split(key, 3)

    x = jax.random.normal(kx, (N, C, H, W), dtype=jnp.float32)
    # deterministic synthetic parameters for h = Conv2d(C, 1, 3, padding=1)
    w = jax.random.normal(kw, (1, C, 3, 3), dtype=jnp.float32) * 0.1
    b = jax.random.normal(kb, (1,), dtype=jnp.float32)

    out = jax.block_until_ready(dc_forward(x, w, b))
    ref = dc_reference(x, w, b)

    assert out.shape == (N, 1, H, W)
    err = float(jnp.max(jnp.abs(out - ref)))
    assert jnp.allclose(out, ref, atol=1e-4, rtol=1e-4), err
    print("KERNEL_OK")
</pallas_src>

<mosaic_0001>
module attributes {stable_mosaic.version = 11 : i64} {
  func.func @_dc_kernel(%arg0: i32, %arg1: i32, %arg2: memref<1x4x16x16xf32, #tpu.memory_space<vmem>>, %arg3: memref<36xf32, #tpu.memory_space<smem>>, %arg4: memref<1xf32, #tpu.memory_space<smem>>, %arg5: memref<1x1x16x16xf32, #tpu.memory_space<vmem>>, %arg6: memref<9x18x18xf32, #tpu.memory_space<vmem>>) attributes {dimension_semantics = [#tpu.dimension_semantics<parallel>, #tpu.dimension_semantics<arbitrary>], iteration_bounds = array<i64: 2, 1>, scalar_prefetch = 0 : i64, scratch_operands = 1 : i64, tpu.core_type = #tpu.core_type<tc>, window_params = [{transform_indices = @transform_0, window_bounds = array<i64: 1, 4, 16, 16>}, {transform_indices = @transform_1, window_bounds = array<i64: 36>}, {transform_indices = @transform_2, window_bounds = array<i64: 1>}, {transform_indices = @transform_3, window_bounds = array<i64: 1, 1, 16, 16>}]} {
    %c0_i32 = arith.constant 0 : i32
    %0 = arith.cmpi eq, %arg1, %c0_i32 : i32
    %1 = arith.extui %0 : i1 to i32
    %c0_i32_0 = arith.constant 0 : i32
    %2 = arith.cmpi ne, %1, %c0_i32_0 : i32
    scf.if %2 {
      %cst_59 = arith.constant 0.000000e+00 : f32
      %72 = vector.broadcast %cst_59 : f32 to vector<9x18x18xf32>
      %c0_60 = arith.constant 0 : index
      %c0_61 = arith.constant 0 : index
      %c0_62 = arith.constant 0 : index
      %73 = vector.load %arg6[%c0_60, %c0_61, %c0_62] : memref<9x18x18xf32, #tpu.memory_space<vmem>>, vector<9x18x18xf32>
      tpu.vector_store %arg6[%c0_60, %c0_61, %c0_62], %72 {strides = array<i32>} : memref<9x18x18xf32, #tpu.memory_space<vmem>>, vector<9x18x18xf32>,
    } else {
    }
    %c4_i32 = arith.constant 4 : i32
    %3 = arith.muli %arg1, %c4_i32 : i32
    %cst = arith.constant 0.000000e+00 : f32
    %4 = vector.broadcast %cst : f32 to vector<16x16xf32>
    %cst_1 = arith.constant 0.000000e+00 : f32
    %5 = vector.broadcast %cst_1 : f32 to vector<16x16xf32>
    %cst_2 = arith.constant 0.000000e+00 : f32
    %6 = vector.broadcast %cst_2 : f32 to vector<16x16xf32>
    %cst_3 = arith.constant 0.000000e+00 : f32
    %7 = vector.broadcast %cst_3 : f32 to vector<16x16xf32>
    %cst_4 = arith.constant 0.000000e+00 : f32
    %8 = vector.broadcast %cst_4 : f32 to vector<16x16xf32>
    %cst_5 = arith.constant 0.000000e+00 : f32
    %9 = vector.broadcast %cst_5 : f32 to vector<16x16xf32>
    %cst_6 = arith.constant 0.000000e+00 : f32
    %10 = vector.broadcast %cst_6 : f32 to vector<16x16xf32>
    %cst_7 = arith.constant 0.000000e+00 : f32
    %11 = vector.broadcast %cst_7 : f32 to vector<16x16xf32>
    %cst_8 = arith.constant 0.000000e+00 : f32
    %12 = vector.broadcast %cst_8 : f32 to vector<16x16xf32>
    %c0_i32_9 = arith.constant 0 : i32
    %c4_i32_10 = arith.constant 4 : i32
    %13 = arith.addi %c0_i32_9, %c4_i32_10 : i32
    %c1_i32 = arith.constant 1 : i32
    %14:9 = scf.for %arg7 = %c0_i32_9 to %13 step %c1_i32 iter_args(%arg8 = %4, %arg9 = %5, %arg10 = %6, %arg11 = %7, %arg12 = %8, %arg13 = %9, %arg14 = %10, %arg15 = %11, %arg16 = %12) -> (vector<16x16xf32>, vector<16x16xf32>, vector<16x16xf32>, vector<16x16xf32>, vector<16x16xf32>, vector<16x16xf32>, vector<16x16xf32>, vector<16x16xf32>, vector<16x16xf32>)  : i32 {
      %c0_59 = arith.constant 0 : index
      %72 = arith.index_cast %arg7 : i32 to index
      %c0_60 = arith.constant 0 : index
      %c0_61 = arith.constant 0 : index
      %73 = vector.load %arg2[%c0_59, %72, %c0_60, %c0_61] : memref<1x4x16x16xf32, #tpu.memory_space<vmem>>, vector<1x1x16x16xf32>
      %74 = vector.shape_cast %73 : vector<1x1x16x16xf32> to vector<16x16xf32>
      %75 = arith.addi %3, %arg7 : i32
      %c9_i32 = arith.constant 9 : i32
      %76 = arith.muli %75, %c9_i32 : i32
      %c0_i32_62 = arith.constant 0 : i32
      %77 = arith.addi %76, %c0_i32_62 : i32
      %78 = arith.index_cast %77 : i32 to index
      %79 = memref.load %arg3[%78] : memref<36xf32, #tpu.memory_space<smem>>
      %80 = vector.broadcast %79 : f32 to vector<16x16xf32>
      %81 = arith.mulf %74, %80 : vector<16x16xf32>
      %82 = arith.addf %arg8, %81 : vector<16x16xf32>
      %c1_i32_63 = arith.constant 1 : i32
      %83 = arith.addi %76, %c1_i32_63 : i32
      %84 = arith.index_cast %83 : i32 to index
      %85 = memref.load %arg3[%84] : memref<36xf32, #tpu.memory_space<smem>>
      %86 = vector.broadcast %85 : f32 to vector<16x16xf32>
      %87 = arith.mulf %74, %86 : vector<16x16xf32>
      %88 = arith.addf %arg9, %87 : vector<16x16xf32>
      %c2_i32 = arith.constant 2 : i32
      %89 = arith.addi %76, %c2_i32 : i32
      %90 = arith.index_cast %89 : i32 to index
      %91 = memref.load %arg3[%90] : memref<36xf32, #tpu.memory_space<smem>>
      %92 = vector.broadcast %91 : f32 to vector<16x16xf32>
      %93 = arith.mulf %74, %92 : vector<16x16xf32>
      %94 = arith.addf %arg10, %93 : vector<16x16xf32>
      %c3_i32 = arith.constant 3 : i32
      %95 = arith.addi %76, %c3_i32 : i32
      %96 = arith.index_cast %95 : i32 to index
      %97 = memref.load %arg3[%96] : memref<36xf32, #tpu.memory_space<smem>>
      %98 = vector.broadcast %97 : f32 to vector<16x16xf32>
      %99 = arith.mulf %74, %98 : vector<16x16xf32>
      %100 = arith.addf %arg11, %99 : vector<16x16xf32>
      %c4_i32_64 = arith.constant 4 : i32
      %101 = arith.addi %76, %c4_i32_64 : i32
      %102 = arith.index_cast %101 : i32 to index
      %103 = memref.load %arg3[%102] : memref<36xf32, #tpu.memory_space<smem>>
      %104 = vector.broadcast %103 : f32 to vector<16x16xf32>
      %105 = arith.mulf %74, %104 : vector<16x16xf32>
      %106 = arith.addf %arg12, %105 : vector<16x16xf32>
      %c5_i32 = arith.constant 5 : i32
      %107 = arith.addi %76, %c5_i32 : i32
      %108 = arith.index_cast %107 : i32 to index
      %109 = memref.load %arg3[%108] : memref<36xf32, #tpu.memory_space<smem>>
      %110 = vector.broadcast %109 : f32 to vector<16x16xf32>
      %111 = arith.mulf %74, %110 : vector<16x16xf32>
      %112 = arith.addf %arg13, %111 : vector<16x16xf32>
      %c6_i32 = arith.constant 6 : i32
      %113 = arith.addi %76, %c6_i32 : i32
      %114 = arith.index_cast %113 : i32 to index
      %115 = memref.load %arg3[%114] : memref<36xf32, #tpu.memory_space<smem>>
      %116 = vector.broadcast %115 : f32 to vector<16x16xf32>
      %117 = arith.mulf %74, %116 : vector<16x16xf32>
      %118 = arith.addf %arg14, %117 : vector<16x16xf32>
      %c7_i32 = arith.constant 7 : i32
      %119 = arith.addi %76, %c7_i32 : i32
      %120 = arith.index_cast %119 : i32 to index
      %121 = memref.load %arg3[%120] : memref<36xf32, #tpu.memory_space<smem>>
      %122 = vector.broadcast %121 : f32 to vector<16x16xf32>
      %123 = arith.mulf %74, %122 : vector<16x16xf32>
      %124 = arith.addf %arg15, %123 : vector<16x16xf32>
      %c8_i32 = arith.constant 8 : i32
      %125 = arith.addi %76, %c8_i32 : i32
      %126 = arith.index_cast %125 : i32 to index
      %127 = memref.load %arg3[%126] : memref<36xf32, #tpu.memory_space<smem>>
      %128 = vector.broadcast %127 : f32 to vector<16x16xf32>
      %129 = arith.mulf %74, %128 : vector<16x16xf32>
      %130 = arith.addf %arg16, %129 : vector<16x16xf32>
      scf.yield %82, %88, %94, %100, %106, %112, %118, %124, %130 : vector<16x16xf32>, vector<16x16xf32>, vector<16x16xf32>, vector<16x16xf32>, vector<16x16xf32>, vector<16x16xf32>, vector<16x16xf32>, vector<16x16xf32>, vector<16x16xf32>
    }
    %c4_i32_11 = arith.constant 4 : i32
    %c0 = arith.constant 0 : index
    %c1 = arith.constant 1 : index
    %c1_12 = arith.constant 1 : index
    %15 = vector.load %arg6[%c0, %c1, %c1_12] : memref<9x18x18xf32, #tpu.memory_space<vmem>>, vector<1x16x16xf32>
    %16 = vector.shape_cast %15 : vector<1x16x16xf32> to vector<16x16xf32>
    %17 = arith.addf %16, %14#0 : vector<16x16xf32>
    %c0_13 = arith.constant 0 : index
    %c1_14 = arith.constant 1 : index
    %c1_15 = arith.constant 1 : index
    %18 = vector.load %arg6[%c0_13, %c1_14, %c1_15] : memref<9x18x18xf32, #tpu.memory_space<vmem>>, vector<1x16x16xf32>
    %19 = vector.shape_cast %18 : vector<1x16x16xf32> to vector<16x16xf32>
    %20 = vector.shape_cast %17 : vector<16x16xf32> to vector<1x16x16xf32>
    tpu.vector_store %arg6[%c0_13, %c1_14, %c1_15], %20 {strides = array<i32>} : memref<9x18x18xf32, #tpu.memory_space<vmem>>, vector<1x16x16xf32>,
    %c1_16 = arith.constant 1 : index
    %c1_17 = arith.constant 1 : index
    %c1_18 = arith.constant 1 : index
    %21 = vector.load %arg6[%c1_16, %c1_17, %c1_18] : memref<9x18x18xf32, #tpu.memory_space<vmem>>, vector<1x16x16xf32>
    %22 = vector.shape_cast %21 : vector<1x16x16xf32> to vector<16x16xf32>
    %23 = arith.addf %22, %14#1 : vector<16x16xf32>
    %c1_19 = arith.constant 1 : index
    %c1_20 = arith.constant 1 : index
    %c1_21 = arith.constant 1 : index
    %24 = vector.load %arg6[%c1_19, %c1_20, %c1_21] : memref<9x18x18xf32, #tpu.memory_space<vmem>>, vector<1x16x16xf32>
    %25 = vector.shape_cast %24 : vector<1x16x16xf32> to vector<16x16xf32>
    %26 = vector.shape_cast %23 : vector<16x16xf32> to vector<1x16x16xf32>
    tpu.vector_store %arg6[%c1_19, %c1_20, %c1_21], %26 {strides = array<i32>} : memref<9x18x18xf32, #tpu.memory_space<vmem>>, vector<1x16x16xf32>,
    %c2 = arith.constant 2 : index
    %c1_22 = arith.constant 1 : index
    %c1_23 = arith.constant 1 : index
    %27 = vector.load %arg6[%c2, %c1_22, %c1_23] : memref<9x18x18xf32, #tpu.memory_space<vmem>>, vector<1x16x16xf32>
    %28 = vector.shape_cast %27 : vector<1x16x16xf32> to vector<16x16xf32>
    %29 = arith.addf %28, %14#2 : vector<16x16xf32>
    %c2_24 = arith.constant 2 : index
    %c1_25 = arith.constant 1 : index
    %c1_26 = arith.constant 1 : index
    %30 = vector.load %arg6[%c2_24, %c1_25, %c1_26] : memref<9x18x18xf32, #tpu.memory_space<vmem>>, vector<1x16x16xf32>
    %31 = vector.shape_cast %30 : vector<1x16x16xf32> to vector<16x16xf32>
    %32 = vector.shape_cast %29 : vector<16x16xf32> to vector<1x16x16xf32>
    tpu.vector_store %arg6[%c2_24, %c1_25, %c1_26], %32 {strides = array<i32>} : memref<9x18x18xf32, #tpu.memory_space<vmem>>, vector<1x16x16xf32>,
    %c3 = arith.constant 3 : index
    %c1_27 = arith.constant 1 : index
    %c1_28 = arith.constant 1 : index
    %33 = vector.load %arg6[%c3, %c1_27, %c1_28] : memref<9x18x18xf32, #tpu.memory_space<vmem>>, vector<1x16x16xf32>
    %34 = vector.shape_cast %33 : vector<1x16x16xf32> to vector<16x16xf32>
    %35 = arith.addf %34, %14#3 : vector<16x16xf32>
    %c3_29 = arith.constant 3 : index
    %c1_30 = arith.constant 1 : index
    %c1_31 = arith.constant 1 : index
    %36 = vector.load %arg6[%c3_29, %c1_30, %c1_31] : memref<9x18x18xf32, #tpu.memory_space<vmem>>, vector<1x16x16xf32>
    %37 = vector.shape_cast %36 : vector<1x16x16xf32> to vector<16x16xf32>
    %38 = vector.shape_cast %35 : vector<16x16xf32> to vector<1x16x16xf32>
    tpu.vector_store %arg6[%c3_29, %c1_30, %c1_31], %38 {strides = array<i32>} : memref<9x18x18xf32, #tpu.memory_space<vmem>>, vector<1x16x16xf32>,
    %c4 = arith.constant 4 : index
    %c1_32 = arith.constant 1 : index
    %c1_33 = arith.constant 1 : index
    %39 = vector.load %arg6[%c4, %c1_32, %c1_33] : memref<9x18x18xf32, #tpu.memory_space<vmem>>, vector<1x16x16xf32>
    %40 = vector.shape_cast %39 : vector<1x16x16xf32> to vector<16x16xf32>
    %41 = arith.addf %40, %14#4 : vector<16x16xf32>
    %c4_34 = arith.constant 4 : index
    %c1_35 = arith.constant 1 : index
    %c1_36 = arith.constant 1 : index
    %42 = vector.load %arg6[%c4_34, %c1_35, %c1_36] : memref<9x18x18xf32, #tpu.memory_space<vmem>>, vector<1x16x16xf32>
    %43 = vector.shape_cast %42 : vector<1x16x16xf32> to vector<16x16xf32>
    %44 = vector.shape_cast %41 : vector<16x16xf32> to vector<1x16x16xf32>
    tpu.vector_store %arg6[%c4_34, %c1_35, %c1_36], %44 {strides = array<i32>} : memref<9x18x18xf32, #tpu.memory_space<vmem>>, vector<1x16x16xf32>,
    %c5 = arith.constant 5 : index
    %c1_37 = arith.constant 1 : index
    %c1_38 = arith.constant 1 : index
    %45 = vector.load %arg6[%c5, %c1_37, %c1_38] : memref<9x18x18xf32, #tpu.memory_space<vmem>>, vector<1x16x16xf32>
    %46 = vector.shape_cast %45 : vector<1x16x16xf32> to vector<16x16xf32>
    %47 = arith.addf %46, %14#5 : vector<16x16xf32>
    %c5_39 = arith.constant 5 : index
    %c1_40 = arith.constant 1 : index
    %c1_41 = arith.constant 1 : index
    %48 = vector.load %arg6[%c5_39, %c1_40, %c1_41] : memref<9x18x18xf32, #tpu.memory_space<vmem>>, vector<1x16x16xf32>
    %49 = vector.shape_cast %48 : vector<1x16x16xf32> to vector<16x16xf32>
    %50 = vector.shape_cast %47 : vector<16x16xf32> to vector<1x16x16xf32>
    tpu.vector_store %arg6[%c5_39, %c1_40, %c1_41], %50 {strides = array<i32>} : memref<9x18x18xf32, #tpu.memory_space<vmem>>, vector<1x16x16xf32>,
    %c6 = arith.constant 6 : index
    %c1_42 = arith.constant 1 : index
    %c1_43 = arith.constant 1 : index
    %51 = vector.load %arg6[%c6, %c1_42, %c1_43] : memref<9x18x18xf32, #tpu.memory_space<vmem>>, vector<1x16x16xf32>
    %52 = vector.shape_cast %51 : vector<1x16x16xf32> to vector<16x16xf32>
    %53 = arith.addf %52, %14#6 : vector<16x16xf32>
    %c6_44 = arith.constant 6 : index
    %c1_45 = arith.constant 1 : index
    %c1_46 = arith.constant 1 : index
    %54 = vector.load %arg6[%c6_44, %c1_45, %c1_46] : memref<9x18x18xf32, #tpu.memory_space<vmem>>, vector<1x16x16xf32>
    %55 = vector.shape_cast %54 : vector<1x16x16xf32> to vector<16x16xf32>
    %56 = vector.shape_cast %53 : vector<16x16xf32> to vector<1x16x16xf32>
    tpu.vector_store %arg6[%c6_44, %c1_45, %c1_46], %56 {strides = array<i32>} : memref<9x18x18xf32, #tpu.memory_space<vmem>>, vector<1x16x16xf32>,
    %c7 = arith.constant 7 : index
    %c1_47 = arith.constant 1 : index
    %c1_48 = arith.constant 1 : index
    %57 = vector.load %arg6[%c7, %c1_47, %c1_48] : memref<9x18x18xf32, #tpu.memory_space<vmem>>, vector<1x16x16xf32>
    %58 = vector.shape_cast %57 : vector<1x16x16xf32> to vector<16x16xf32>
    %59 = arith.addf %58, %14#7 : vector<16x16xf32>
    %c7_49 = arith.constant 7 : index
    %c1_50 = arith.constant 1 : index
    %c1_51 = arith.constant 1 : index
    %60 = vector.load %arg6[%c7_49, %c1_50, %c1_51] : memref<9x18x18xf32, #tpu.memory_space<vmem>>, vector<1x16x16xf32>
    %61 = vector.shape_cast %60 : vector<1x16x16xf32> to vector<16x16xf32>
    %62 = vector.shape_cast %59 : vector<16x16xf32> to vector<1x16x16xf32>
    tpu.vector_store %arg6[%c7_49, %c1_50, %c1_51], %62 {strides = array<i32>} : memref<9x18x18xf32, #tpu.memory_space<vmem>>, vector<1x16x16xf32>,
    %c8 = arith.constant 8 : index
    %c1_52 = arith.constant 1 : index
    %c1_53 = arith.constant 1 : index
    %63 = vector.load %arg6[%c8, %c1_52, %c1_53] : memref<9x18x18xf32, #tpu.memory_space<vmem>>, vector<1x16x16xf32>
    %64 = vector.shape_cast %63 : vector<1x16x16xf32> to vector<16x16xf32>
    %65 = arith.addf %64, %14#8 : vector<16x16xf32>
    %c8_54 = arith.constant 8 : index
    %c1_55 = arith.constant 1 : index
    %c1_56 = arith.constant 1 : index
    %66 = vector.load %arg6[%c8_54, %c1_55, %c1_56] : memref<9x18x18xf32, #tpu.memory_space<vmem>>, vector<1x16x16xf32>
    %67 = vector.shape_cast %66 : vector<1x16x16xf32> to vector<16x16xf32>
    %68 = vector.shape_cast %65 : vector<16x16xf32> to vector<1x16x16xf32>
    tpu.vector_store %arg6[%c8_54, %c1_55, %c1_56], %68 {strides = array<i32>} : memref<9x18x18xf32, #tpu.memory_space<vmem>>, vector<1x16x16xf32>,
    %c0_i32_57 = arith.constant 0 : i32
    %69 = arith.cmpi eq, %arg1, %c0_i32_57 : i32
    %70 = arith.extui %69 : i1 to i32
    %c0_i32_58 = arith.constant 0 : i32
    %71 = arith.cmpi ne, %70, %c0_i32_58 : i32
    scf.if %71 {
      %c0_59 = arith.constant 0 : index
      %72 = memref.load %arg4[%c0_59] : memref<1xf32, #tpu.memory_space<smem>>
      %73 = vector.broadcast %72 : f32 to vector<16x16xf32>
      %c0_60 = arith.constant 0 : index
      %c0_61 = arith.constant 0 : index
      %c0_62 = arith.constant 0 : index
      %74 = vector.load %arg6[%c0_60, %c0_61, %c0_62] : memref<9x18x18xf32, #tpu.memory_space<vmem>>, vector<1x16x16xf32>
      %75 = vector.shape_cast %74 : vector<1x16x16xf32> to vector<16x16xf32>
      %76 = arith.addf %73, %75 : vector<16x16xf32>
      %c1_63 = arith.constant 1 : index
      %c0_64 = arith.constant 0 : index
      %c1_65 = arith.constant 1 : index
      %77 = vector.load %arg6[%c1_63, %c0_64, %c1_65] : memref<9x18x18xf32, #tpu.memory_space<vmem>>, vector<1x16x16xf32>
      %78 = vector.shape_cast %77 : vector<1x16x16xf32> to vector<16x16xf32>
      %79 = arith.addf %76, %78 : vector<16x16xf32>
      %c2_66 = arith.constant 2 : index
      %c0_67 = arith.constant 0 : index
      %c2_68 = arith.constant 2 : index
      %80 = vector.load %arg6[%c2_66, %c0_67, %c2_68] : memref<9x18x18xf32, #tpu.memory_space<vmem>>, vector<1x16x16xf32>
      %81 = vector.shape_cast %80 : vector<1x16x16xf32> to vector<16x16xf32>
      %82 = arith.addf %79, %81 : vector<16x16xf32>
      %c3_69 = arith.constant 3 : index
      %c1_70 = arith.constant 1 : index
      %c0_71 = arith.constant 0 : index
      %83 = vector.load %arg6[%c3_69, %c1_70, %c0_71] : memref<9x18x18xf32, #tpu.memory_space<vmem>>, vector<1x16x16xf32>
      %84 = vector.shape_cast %83 : vector<1x16x16xf32> to vector<16x16xf32>
      %85 = arith.addf %82, %84 : vector<16x16xf32>
      %c4_72 = arith.constant 4 : index
      %c1_73 = arith.constant 1 : index
      %c1_74 = arith.constant 1 : index
      %86 = vector.load %arg6[%c4_72, %c1_73, %c1_74] : memref<9x18x18xf32, #tpu.memory_space<vmem>>, vector<1x16x16xf32>
      %87 = vector.shape_cast %86 : vector<1x16x16xf32> to vector<16x16xf32>
      %88 = arith.addf %85, %87 : vector<16x16xf32>
      %c5_75 = arith.constant 5 : index
      %c1_76 = arith.constant 1 : index
      %c2_77 = arith.constant 2 : index
      %89 = vector.load %arg6[%c5_75, %c1_76, %c2_77] : memref<9x18x18xf32, #tpu.memory_space<vmem>>, vector<1x16x16xf32>
      %90 = vector.shape_cast %89 : vector<1x16x16xf32> to vector<16x16xf32>
      %91 = arith.addf %88, %90 : vector<16x16xf32>
      %c6_78 = arith.constant 6 : index
      %c2_79 = arith.constant 2 : index
      %c0_80 = arith.constant 0 : index
      %92 = vector.load %arg6[%c6_78, %c2_79, %c0_80] : memref<9x18x18xf32, #tpu.memory_space<vmem>>, vector<1x16x16xf32>
      %93 = vector.shape_cast %92 : vector<1x16x16xf32> to vector<16x16xf32>
      %94 = arith.addf %91, %93 : vector<16x16xf32>
      %c7_81 = arith.constant 7 : index
      %c2_82 = arith.constant 2 : index
      %c1_83 = arith.constant 1 : index
      %95 = vector.load %arg6[%c7_81, %c2_82, %c1_83] : memref<9x18x18xf32, #tpu.memory_space<vmem>>, vector<1x16x16xf32>
      %96 = vector.shape_cast %95 : vector<1x16x16xf32> to vector<16x16xf32>
      %97 = arith.addf %94, %96 : vector<16x16xf32>
      %c8_84 = arith.constant 8 : index
      %c2_85 = arith.constant 2 : index
      %c2_86 = arith.constant 2 : index
      %98 = vector.load %arg6[%c8_84, %c2_85, %c2_86] : memref<9x18x18xf32, #tpu.memory_space<vmem>>, vector<1x16x16xf32>
      %99 = vector.shape_cast %98 : vector<1x16x16xf32> to vector<16x16xf32>
      %100 = arith.addf %97, %99 : vector<16x16xf32>
      %c0_87 = arith.constant 0 : index
      %c0_88 = arith.constant 0 : index
      %c0_89 = arith.constant 0 : index
      %c0_90 = arith.constant 0 : index
      %101 = vector.load %arg5[%c0_87, %c0_88, %c0_89, %c0_90] : memref<1x1x16x16xf32, #tpu.memory_space<vmem>>, vector<1x1x16x16xf32>
      %102 = vector.shape_cast %101 : vector<1x1x16x16xf32> to vector<16x16xf32>
      %103 = vector.shape_cast %100 : vector<16x16xf32> to vector<1x1x16x16xf32>
      tpu.vector_store %arg5[%c0_87, %c0_88, %c0_89, %c0_90], %103 {strides = array<i32>} : memref<1x1x16x16xf32, #tpu.memory_space<vmem>>, vector<1x1x16x16xf32>,
    } else {
    }
    return
  }
  func.func @transform_0(%arg0: i32, %arg1: i32) -> (i32, i32, i32, i32) {
    %c0_i32 = arith.constant 0 : i32
    %c0_i32_0 = arith.constant 0 : i32
    %c0_i32_1 = arith.constant 0 : i32
    return %arg0, %arg1, %c0_i32, %c0_i32_0 : i32, i32, i32, i32
  }
  func.func @transform_1(%arg0: i32, %arg1: i32) -> i32 {
    %c0_i32 = arith.constant 0 : i32
    %c0_i32_0 = arith.constant 0 : i32
    return %c0_i32 : i32
  }
  func.func @transform_2(%arg0: i32, %arg1: i32) -> i32 {
    %c0_i32 = arith.constant 0 : i32
    %c0_i32_0 = arith.constant 0 : i32
    return %c0_i32 : i32
  }
  func.func @transform_3(%arg0: i32, %arg1: i32) -> (i32, i32, i32, i32) {
    %c0_i32 = arith.constant 0 : i32
    %c0_i32_0 = arith.constant 0 : i32
    %c0_i32_1 = arith.constant 0 : i32
    %c0_i32_2 = arith.constant 0 : i32
    return %arg0, %c0_i32, %c0_i32_0, %c0_i32_1 : i32, i32, i32, i32
  }
}

</mosaic_0001>

<llo_original>
// kernel: tpu_custom_call.1
$region0: #{tpu_custom_call.1}
  #allocation0 [shape = 'u32[]', space=smem, size = 0x4, offset = 0x4, fixed_abs, tag = 'smem constant byte address 0x4 - core index']
  #allocation1 [shape = 'u32[144,128]{1,0:T(1,128)}', space=vmem, size = 0x12000, scoped, tag = 'internal scratch']
  #allocation2 [shape = 'f32[9,18,18]{2,1,0:T(8,128)}', space=vmem, size = 0x1b000, scoped, tag = 'scratch operand']
  #allocation3 [shape = 'f32[1]{0:T(128)S(6)}', space=smem, size = 0x200, scoped, tag = 'scoped memory for tpu_custom_call.1']
  %s0 = inlined_call_operand.hbm [shape: f32[2,4,16,16], index: 0, kind: input, shape index: {}]
  %s1 = inlined_call_operand.vmem [shape: f32[36], index: 1, kind: input, shape index: {}]
  %s2 = inlined_call_operand.<no memory space> [shape: f32[1], index: 2, kind: input, shape index: {}]
  %s3 = inlined_call_operand.hbm [shape: f32[2,1,16,16], index: 3, kind: output, shape index: {}]
  %s4 = sld [smem:[#allocation0]]
  $region68: #{tpu_custom_call.1} parent=0
    _
  %s6 = ssub.s32 1, %s4
  %s7 = scalar_select 0, %s6, %s4
  %8 = sst [smem:[#allocation3]] %s2
  $region1: #{tpu_custom_call.1} parent=0
    #allocation4 [shape = 'u8[65536]{0}', space=vmem, size = 0x10000, scoped, tag = 'input window, operand 0']
    #allocation5 [shape = 's32[2]{0}', space=sflag, size = 0x8, scoped, tag = 'scoped memory for tpu_custom_call.1']
    #allocation6 [shape = 's32[2]{0}', space=sflag, size = 0x8, scoped, tag = 'scoped memory for tpu_custom_call.1']
    #allocation7 [shape = 's32[2]{0}', space=sflag, size = 0x8, scoped, tag = 'scoped memory for tpu_custom_call.1']
    #allocation8 [shape = 'u8[512]{0}', space=smem, size = 0x200, scoped, tag = 'input window, operand 1, single buffered']
    #allocation9 [shape = 'u8[16384]{0}', space=vmem, size = 0x4000, scoped, tag = 'output window, operand 0']
    %9 = vsyncpa [#allocation5], 0
    %s10 = scalar_lea.sflag [#allocation5], 1
    %11 = vsyncpa %s10, 0
    %12 = vsyncpa [#allocation7], 0
    %13 = vsyncpa [#allocation6], 0
    %s14 = scalar_lea.sflag [#allocation6], 1
    %15 = vsyncpa %s14, 0
    loop: start=0, step=1, limit=4
    $region2: #{tpu_custom_call.1} parent=1 // loop_pre_header
      _
    $region3: #{tpu_custom_call.1} parent=1 // loop_header
      %s17 = sphi 0, %s21
      %p18 = scmp.ge.s32.totalorder %s17, 4
      %s24 = sphi 0, %s36
      %s25 = sphi 0, %s32
      %s26 = sphi 0, %s24
      %s27 = sphi 0, %s25
      %s28 = sphi 0, %s26
      %s29 = sphi 0, %s27
      %s41 = sphi 0, %s43
      %s44 = sphi 0, %s41
      %s45 = sphi 0, %s44
      %s61 = sphi 0, %s45
      %s65 = sphi 0, %s65
      %s67 = sphi 0, %s65
      %s68 = sphi 0, %s67
      %s82 = sphi 0, %s68
      %s86 = sphi 0, %s86
      %s88 = sphi 0, %s86
      %s89 = sphi 0, %s88
      %s103 = sphi 0, %s89
      %s109 = sphi 0, %s111
      %s112 = sphi 0, %s109
      %s113 = sphi 0, %s112
      %s129 = sphi 0, %s113
    $region4: #{tpu_custom_call.1} parent=1 // loop_header_branch
      %20 = sbr.rel (%p18) target = $region8
    $region5: #{tpu_custom_call.1} parent=1 // loop_body
      %s22 = ssub.s32 %s17, 1
      %s23 = ssub.s32 %s17, 2
      %s30 = sadd.s32 1, %s25
      %p31 = scmp.ge.s32.totalorder %s30, 1
      %s32 = scalar_select %p31, 0, %s30
      %s33 = sadd.s32 1, %s24
      %s34 = scalar_select %p31, %s33, %s24
      %p35 = scmp.ge.s32.totalorder %s34, 2
      %s36 = scalar_select %p35, 0, %s34
      %s37 = ssub.s32 %s24, %s36
      %s38 = ssub.s32 %s25, %s32
      %s39 = sor.u32 %s37, %s38
      %p40 = scmp.eq.s32.totalorder %s39, 0
      %s42 = sadd.s32 %s41, 1
      %s43 = scalar_select %p40, %s41, %s42
      %p46 = pneg %p40
      %p47 = scmp.eq.s32.totalorder %s17, 1
      %p48 = por %p46, %p47
      %p49 = scmp.ne.s32.totalorder %s41, %s44
      %p50 = scmp.eq.s32.totalorder %s17, 0
      %p51 = por %p49, %p50
      %p52 = scmp.ne.s32.totalorder %s41, %s44
      %p53 = scmp.eq.s32.totalorder %s22, 1
      %p54 = por %p52, %p53
      %p55 = scmp.ne.s32.totalorder %s44, %s45
      %p56 = scmp.eq.s32.totalorder %s22, 0
      %p57 = por %p55, %p56
      %p58 = scmp.ne.s32.totalorder %s44, %s45
      %p59 = scmp.eq.s32.totalorder %s23, 1
      %p60 = por %p58, %p59
      %p62 = scmp.ne.s32.totalorder %s45, %s61
      %p63 = scmp.eq.s32.totalorder %s23, 0
      %p64 = por %p62, %p63
      %s66 = sadd.s32 %s65, 1
      %p69 = scmp.eq.s32.totalorder %s17, 1
      %p70 = scmp.ne.s32.totalorder %s65, %s67
      %p71 = scmp.eq.s32.totalorder %s17, 0
      %p72 = por %p70, %p71
      %p73 = scmp.ne.s32.totalorder %s65, %s67
      %p74 = scmp.eq.s32.totalorder %s22, 1
      %p75 = por %p73, %p74
      %p76 = scmp.ne.s32.totalorder %s67, %s68
      %p77 = scmp.eq.s32.totalorder %s22, 0
      %p78 = por %p76, %p77
      %p79 = scmp.ne.s32.totalorder %s67, %s68
      %p80 = scmp.eq.s32.totalorder %s23, 1
      %p81 = por %p79, %p80
      %p83 = scmp.ne.s32.totalorder %s68, %s82
      %p84 = scmp.eq.s32.totalorder %s23, 0
      %p85 = por %p83, %p84
      %s87 = sadd.s32 %s86, 1
      %p90 = scmp.eq.s32.totalorder %s17, 1
      %p91 = scmp.ne.s32.totalorder %s86, %s88
      %p92 = scmp.eq.s32.totalorder %s17, 0
      %p93 = por %p91, %p92
      %p94 = scmp.ne.s32.totalorder %s86, %s88
      %p95 = scmp.eq.s32.totalorder %s22, 1
      %p96 = por %p94, %p95
      %p97 = scmp.ne.s32.totalorder %s88, %s89
      %p98 = scmp.eq.s32.totalorder %s22, 0
      %p99 = por %p97, %p98
      %p100 = scmp.ne.s32.totalorder %s88, %s89
      %p101 = scmp.eq.s32.totalorder %s23, 1
      %p102 = por %p100, %p101
      %p104 = scmp.ne.s32.totalorder %s89, %s103
      %p105 = scmp.eq.s32.totalorder %s23, 0
      %p106 = por %p104, %p105
      %s107 = ssub.s32 %s24, %s36
      %p108 = scmp.eq.s32.totalorder %s107, 0
      %s110 = sadd.s32 %s109, 1
      %s111 = scalar_select %p108, %s109, %s110
      %p114 = pneg %p108
      %p115 = scmp.eq.s32.totalorder %s17, 1
      %p116 = por %p114, %p115
      %p117 = scmp.ne.s32.totalorder %s109, %s112
      %p118 = scmp.eq.s32.totalorder %s17, 0
      %p119 = por %p117, %p118
      %p120 = scmp.ne.s32.totalorder %s109, %s112
      %p121 = scmp.eq.s32.totalorder %s22, 1
      %p122 = por %p120, %p121
      %p123 = scmp.ne.s32.totalorder %s112, %s113
      %p124 = scmp.eq.s32.totalorder %s22, 0
      %p125 = por %p123, %p124
      %p126 = scmp.ne.s32.totalorder %s112, %s113
      %p127 = scmp.eq.s32.totalorder %s23, 1
      %p128 = por %p126, %p127
      %p130 = scmp.ne.s32.totalorder %s113, %s129
      %p131 = scmp.eq.s32.totalorder %s23, 0
      %p132 = por %p130, %p131
      %p133 = scmp.le.s32.totalorder 1, %s17
      %p134 = scmp.lt.s32.totalorder %s17, 3
      %p135 = pnand %p133, %p134
      %p136 = pneg %p135
      // Predicated region
      $region9: #{tpu_custom_call.1} parent=5 // pred_check
        _
      $region10: #{tpu_custom_call.1} parent=5 // pred_check_branch
        %138 = sbr.rel (%p135) target = $region12
      $region11: #{tpu_custom_call.1} parent=5 // pred_region
        %s139 = ssub.s32 %s17, 1
        // Predicated region
        $region13: #{tpu_custom_call.1} parent=11 // pred_check
          %p140 = pneg %p78
        $region14: #{tpu_custom_call.1} parent=11 // pred_check_branch
          %142 = sbr.rel (%p140) target = $region16
        $region15: #{tpu_custom_call.1} parent=11 // pred_region
          %s144 = ssub.s32 16, 16
          %145 = vsyncadd [#allocation7], %s144
          %s147 = sshll.u32 %s1, 4
          %s148 = int_to_ptr.vmem [resolvable:$true] %s147
          %150 = dma.vmem_to_smem %s148, 16, [#allocation8], [#allocation7]
        $region16: #{tpu_custom_call.1} parent=11 // pred_fallthru
          _
        // Predicated region
        $region17: #{tpu_custom_call.1} parent=11 // pred_check
          %p151 = pneg %p99
        $region18: #{tpu_custom_call.1} parent=11 // pred_check_branch
          %153 = sbr.rel (%p151) target = $region20
        $region19: #{tpu_custom_call.1} parent=11 // pred_region
          _
        $region20: #{tpu_custom_call.1} parent=11 // pred_fallthru
          _
      $region12: #{tpu_custom_call.1} parent=5 // pred_fallthru
        _
      %p154 = scmp.lt.s32.totalorder %s17, 2
      // Predicated region
      $region21: #{tpu_custom_call.1} parent=5 // pred_check
        %p155 = pneg %p154
      $region22: #{tpu_custom_call.1} parent=5 // pred_check_branch
        %157 = sbr.rel (%p155) target = $region24
      $region23: #{tpu_custom_call.1} parent=5 // pred_region
        // Predicated region
        $region25: #{tpu_custom_call.1} parent=23 // pred_check
          %p158 = pneg %p51
        $region26: #{tpu_custom_call.1} parent=23 // pred_check_branch
          %160 = sbr.rel (%p158) target = $region28
        $region27: #{tpu_custom_call.1} parent=23 // pred_region
          %s161 = sand.u32 %s41, 1
          %s162 = scalar_lea.sflag [#allocation5], %s161
          %s163 = sand.u32 %s41, 1
          %s164 = smul.addr %s163, 64
          %s165 = scalar_lea.vmem [#allocation4], %s164
          %s166 = smul.u32 4, %s25
          %s168 = ssub.s32 1024, 1024
          %169 = vsyncadd %s162, %s168
          %s170 = smul.addr %s166, 2
          %s171 = smul.addr %s24, 8
          %s172 = sadd.s32 %s170, %s171
          %s173 = smul.addr %s172, 128
          %s174 = scalar_lea.hbm %s0, %s173
          %s175 = sshll.u32 %s165, 4
          %s176 = int_to_ptr.vmem [resolvable:$true] %s175
          %181 = dma.hbm_to_vmem [thread:$0]  %s174, 1024, %s176, %s162, 128, 128, 8
        $region28: #{tpu_custom_call.1} parent=23 // pred_fallthru
          _
      $region24: #{tpu_custom_call.1} parent=5 // pred_fallthru
        _
      %p182 = scmp.le.s32.totalorder 1, %s17
      %p183 = scmp.lt.s32.totalorder %s17, 3
      %p184 = pnand %p182, %p183
      %p185 = pneg %p184
      // Predicated region
      $region29: #{tpu_custom_call.1} parent=5 // pred_check
        _
      $region30: #{tpu_custom_call.1} parent=5 // pred_check_branch
        %187 = sbr.rel (%p184) target = $region32
      $region31: #{tpu_custom_call.1} parent=5 // pred_region
        %s188 = ssub.s32 %s17, 1
        %s189 = sand.u32 %s44, 1
        %s190 = scalar_lea.sflag [#allocation5], %s189
        %s191 = sand.u32 %s44, 1
        %s192 = smul.addr %s191, 64
        %s193 = scalar_lea.vmem [#allocation4], %s192
        // Predicated region
        $region33: #{tpu_custom_call.1} parent=31 // pred_check
          %p194 = pneg %p57
        $region34: #{tpu_custom_call.1} parent=31 // pred_check_branch
          %196 = sbr.rel (%p194) target = $region36
        $region35: #{tpu_custom_call.1} parent=31 // pred_region
          %197 = dma.done %s190, 1024
        $region36: #{tpu_custom_call.1} parent=31 // pred_fallthru
          _
        // Predicated region
        $region37: #{tpu_custom_call.1} parent=31 // pred_check
          %p198 = pneg %p78
        $region38: #{tpu_custom_call.1} parent=31 // pred_check_branch
          %200 = sbr.rel (%p198) target = $region40
        $region39: #{tpu_custom_call.1} parent=31 // pred_region
          %201 = dma.done [#allocation7], 16
        $region40: #{tpu_custom_call.1} parent=31 // pred_fallthru
          _
        %202 = sfence
        %s203 = sand.u32 %s44, 1
        %s204 = scalar_lea.sflag [#allocation5], %s203
        %s205 = sand.u32 %s44, 1
        %s206 = smul.addr %s205, 64
        %s207 = scalar_lea.vmem [#allocation4], %s206
        %p208 = pneg %p57
        %p209 = pneg %p54
        %p210 = pneg %p78
        %p211 = pneg %p75
        %p212 = pneg %p99
        %p213 = pneg %p96
        %p214 = pneg %p125
        %p215 = pneg %p122
        %s216 = sand.u32 %s112, 1
        %s217 = scalar_lea.sflag [#allocation6], %s216
        %s218 = sand.u32 %s112, 1
        %s219 = smul.addr %s218, 16
        %s220 = scalar_lea.vmem [#allocation9], %s219
        %s221 = smul.u32 4, %s27
        %p222 = scmp.eq.s32.totalorder %s27, 0
        // Predicated region
        $region41: #{tpu_custom_call.1} parent=31 // pred_check
          %p223 = pneg %p222
        $region42: #{tpu_custom_call.1} parent=31 // pred_check_branch
          %225 = sbr.rel (%p223) target = $region44
        $region43: #{tpu_custom_call.1} parent=31 // pred_region
          %vm226 = vcmask 146432
          %227 = vst.msk [vmem:[#allocation2] sm:$0xff] %vm226, 0.0
          %228 = vst.msk [vmem:[#allocation2 + $0x8] sm:$0xff] %vm226, 0.0
          %vm229 = vcmask 140288
          %230 = vst.msk [vmem:[#allocation2 + $0x10] sm:$0x3] %vm229, 0.0
          %231 = vst.msk [vmem:[#allocation2 + $0x18] sm:$0xff] %vm226, 0.0
          %232 = vst.msk [vmem:[#allocation2 + $0x20] sm:$0xff] %vm226, 0.0
          %233 = vst.msk [vmem:[#allocation2 + $0x28] sm:$0x3] %vm229, 0.0
          %234 = vst.msk [vmem:[#allocation2 + $0x30] sm:$0xff] %vm226, 0.0
          %235 = vst.msk [vmem:[#allocation2 + $0x38] sm:$0xff] %vm226, 0.0
          %236 = vst.msk [vmem:[#allocation2 + $0x40] sm:$0x3] %vm229, 0.0
          %237 = vst.msk [vmem:[#allocation2 + $0x48] sm:$0xff] %vm226, 0.0
          %238 = vst.msk [vmem:[#allocation2 + $0x50] sm:$0xff] %vm226, 0.0
          %239 = vst.msk [vmem:[#allocation2 + $0x58] sm:$0x3] %vm229, 0.0
          %240 = vst.msk [vmem:[#allocation2 + $0x60] sm:$0xff] %vm226, 0.0
          %241 = vst.msk [vmem:[#allocation2 + $0x68] sm:$0xff] %vm226, 0.0
          %242 = vst.msk [vmem:[#allocation2 + $0x70] sm:$0x3] %vm229, 0.0
          %243 = vst.msk [vmem:[#allocation2 + $0x78] sm:$0xff] %vm226, 0.0
          %244 = vst.msk [vmem:[#allocation2 + $0x80] sm:$0xff] %vm226, 0.0
          %245 = vst.msk [vmem:[#allocation2 + $0x88] sm:$0x3] %vm229, 0.0
          %246 = vst.msk [vmem:[#allocation2 + $0x90] sm:$0xff] %vm226, 0.0
          %247 = vst.msk [vmem:[#allocation2 + $0x98] sm:$0xff] %vm226, 0.0
          %248 = vst.msk [vmem:[#allocation2 + $0xa0] sm:$0x3] %vm229, 0.0
          %249 = vst.msk [vmem:[#allocation2 + $0xa8] sm:$0xff] %vm226, 0.0
          %250 = vst.msk [vmem:[#allocation2 + $0xb0] sm:$0xff] %vm226, 0.0
          %251 = vst.msk [vmem:[#allocation2 + $0xb8] sm:$0x3] %vm229, 0.0
          %252 = vst.msk [vmem:[#allocation2 + $0xc0] sm:$0xff] %vm226, 0.0
          %253 = vst.msk [vmem:[#allocation2 + $0xc8] sm:$0xff] %vm226, 0.0
          %254 = vst.msk [vmem:[#allocation2 + $0xd0] sm:$0x3] %vm229, 0.0
        $region44: #{tpu_custom_call.1} parent=31 // pred_fallthru
          _
        %s255 = smul.u32 %s27, 4
        loop: start=0, step=1, limit=4
        $region45: #{tpu_custom_call.1} parent=31 // loop_pre_header
          _
        $region46: #{tpu_custom_call.1} parent=31 // loop_header
          %s257 = sphi 0, %s261
          %p258 = scmp.ge.s32.totalorder %s257, 4
          %v262 = vphi 0.0, %v290
          %v263 = vphi 0.0, %v291
          %v264 = vphi 0.0, %v297
          %v265 = vphi 0.0, %v298
          %v266 = vphi 0.0, %v304
          %v267 = vphi 0.0, %v305
          %v268 = vphi 0.0, %v311
          %v269 = vphi 0.0, %v312
          %v270 = vphi 0.0, %v318
          %v271 = vphi 0.0, %v319
          %v272 = vphi 0.0, %v325
          %v273 = vphi 0.0, %v326
          %v274 = vphi 0.0, %v332
          %v275 = vphi 0.0, %v333
          %v276 = vphi 0.0, %v339
          %v277 = vphi 0.0, %v340
          %v278 = vphi 0.0, %v346
          %v279 = vphi 0.0, %v347
        $region47: #{tpu_custom_call.1} parent=31 // loop_header_branch
          %260 = sbr.rel (%p258) target = $region51
        $region48: #{tpu_custom_call.1} parent=31 // loop_body
          %s280 = smul.u32 %s257, 16
          %s281 = scalar_lea.vmem %s193, %s280 [#allocation4]
          %v282 = vld [vmem:[%s281] sm:$0xff]
          %v283 = vld [vmem:[%s281 + $0x8] sm:$0xff]
          %s284 = sadd.s32 %s255, %s257
          %s285 = smul.u32 %s284, 9
          %s286 = sld [smem:[#allocation8 + %s285]]
          %v287 = vstv %s286
          %v288 = vmul.f32 %v282, %v287
          %v289 = vmul.f32 %v283, %v287
          %v290 = vadd.f32 %v262, %v288
          %v291 = vadd.f32 %v263, %v289
          %s292 = sadd.s32 %s285, 1
          %s293 = sld [smem:[#allocation8 + %s292]]
          %v294 = vstv %s293
          %v295 = vmul.f32 %v282, %v294
          %v296 = vmul.f32 %v283, %v294
          %v297 = vadd.f32 %v264, %v295
          %v298 = vadd.f32 %v265, %v296
          %s299 = sadd.s32 %s285, 2
          %s300 = sld [smem:[#allocation8 + %s299]]
          %v301 = vstv %s300
          %v302 = vmul.f32 %v282, %v301
          %v303 = vmul.f32 %v283, %v301
          %v304 = vadd.f32 %v266, %v302
          %v305 = vadd.f32 %v267, %v303
          %s306 = sadd.s32 %s285, 3
          %s307 = sld [smem:[#allocation8 + %s306]]
          %v308 = vstv %s307
          %v309 = vmul.f32 %v282, %v308
          %v310 = vmul.f32 %v283, %v308
          %v311 = vadd.f32 %v268, %v309
          %v312 = vadd.f32 %v269, %v310
          %s313 = sadd.s32 %s285, 4
          %s314 = sld [smem:[#allocation8 + %s313]]
          %v315 = vstv %s314
          %v316 = vmul.f32 %v282, %v315
          %v317 = vmul.f32 %v283, %v315
          %v318 = vadd.f32 %v270, %v316
          %v319 = vadd.f32 %v271, %v317
          %s320 = sadd.s32 %s285, 5
          %s321 = sld [smem:[#allocation8 + %s320]]
          %v322 = vstv %s321
          %v323 = vmul.f32 %v282, %v322
          %v324 = vmul.f32 %v283, %v322
          %v325 = vadd.f32 %v272, %v323
          %v326 = vadd.f32 %v273, %v324
          %s327 = sadd.s32 %s285, 6
          %s328 = sld [smem:[#allocation8 + %s327]]
          %v329 = vstv %s328
          %v330 = vmul.f32 %v282, %v329
          %v331 = vmul.f32 %v283, %v329
          %v332 = vadd.f32 %v274, %v330
          %v333 = vadd.f32 %v275, %v331
          %s334 = sadd.s32 %s285, 7
          %s335 = sld [smem:[#allocation8 + %s334]]
          %v336 = vstv %s335
          %v337 = vmul.f32 %v282, %v336
          %v338 = vmul.f32 %v283, %v336
          %v339 = vadd.f32 %v276, %v337
          %v340 = vadd.f32 %v277, %v338
          %s341 = sadd.s32 %s285, 8
          %s342 = sld [smem:[#allocation8 + %s341]]
          %v343 = vstv %s342
          %v344 = vmul.f32 %v282, %v343
          %v345 = vmul.f32 %v283, %v343
          %v346 = vadd.f32 %v278, %v344
          %v347 = vadd.f32 %v279, %v345
        $region49: #{tpu_custom_call.1} parent=31 // loop_footer
          %s261 = sadd.s32 1, %s257
        $region50: #{tpu_custom_call.1} parent=31 // loop_footer_branch
          %256 = sbr.rel target = $region46
        $region51: #{tpu_custom_call.1} parent=31 // loop_exit
          _
        %v348 = vld [vmem:[#allocation2 + $0x1] sm:$0xff]
        %v349 = vld [vmem:[#allocation2 + $0x9] sm:$0xff]
        %352 = vrot.lane.b32.xlu0 %v262, 1
        %v353 = vpop.permute.xlu0 %352
        %354 = vrot.lane.b32.xlu0 %v263, 1
        %v355 = vpop.permute.xlu0 %354
        %v358 = vadd.f32 %v348, %v353
        %v359 = vadd.f32 %v349, %v355
        %vm360 = vcmask 138248
        %361 = vst.msk [vmem:[#allocation2 + $0x1] sm:$0xff] %vm360, %v358
        %362 = vst.msk [vmem:[#allocation2 + $0x9] sm:$0xff] %vm360, %v359
        %s363 = scalar_lea.vmem [#allocation2], 24
        %v364 = vld [vmem:[%s363 + $0x1] sm:$0xff]
        %v365 = vld [vmem:[%s363 + $0x9] sm:$0xff]
        %368 = vrot.lane.b32.xlu0 %v264, 1
        %v369 = vpop.permute.xlu0 %368
        %370 = vrot.lane.b32.xlu0 %v265, 1
        %v371 = vpop.permute.xlu0 %370
        %v374 = vadd.f32 %v364, %v369
        %v375 = vadd.f32 %v365, %v371
        %376 = vst.msk [vmem:[%s363 + $0x1] sm:$0xff] %vm360, %v374
        %377 = vst.msk [vmem:[%s363 + $0x9] sm:$0xff] %vm360, %v375
        %s378 = scalar_lea.vmem [#allocation2], 48
        %v379 = vld [vmem:[%s378 + $0x1] sm:$0xff]
        %v380 = vld [vmem:[%s378 + $0x9] sm:$0xff]
        %383 = vrot.lane.b32.xlu0 %v266, 1
        %v384 = vpop.permute.xlu0 %383
        %385 = vrot.lane.b32.xlu0 %v267, 1
        %v386 = vpop.permute.xlu0 %385
        %v389 = vadd.f32 %v379, %v384
        %v390 = vadd.f32 %v380, %v386
        %391 = vst.msk [vmem:[%s378 + $0x1] sm:$0xff] %vm360, %v389
        %392 = vst.msk [vmem:[%s378 + $0x9] sm:$0xff] %vm360, %v390
        %s393 = scalar_lea.vmem [#allocation2], 72
        %v394 = vld [vmem:[%s393 + $0x1] sm:$0xff]
        %v395 = vld [vmem:[%s393 + $0x9] sm:$0xff]
        %398 = vrot.lane.b32.xlu0 %v268, 1
        %v399 = vpop.permute.xlu0 %398
        %400 = vrot.lane.b32.xlu0 %v269, 1
        %v401 = vpop.permute.xlu0 %400
        %v404 = vadd.f32 %v394, %v399
        %v405 = vadd.f32 %v395, %v401
        %406 = vst.msk [vmem:[%s393 + $0x1] sm:$0xff] %vm360, %v404
        %407 = vst.msk [vmem:[%s393 + $0x9] sm:$0xff] %vm360, %v405
        %s408 = scalar_lea.vmem [#allocation2], 96
        %v409 = vld [vmem:[%s408 + $0x1] sm:$0xff]
        %v410 = vld [vmem:[%s408 + $0x9] sm:$0xff]
        %413 = vrot.lane.b32.xlu0 %v270, 1
        %v414 = vpop.permute.xlu0 %413
        %415 = vrot.lane.b32.xlu0 %v271, 1
        %v416 = vpop.permute.xlu0 %415
        %v419 = vadd.f32 %v409, %v414
        %v420 = vadd.f32 %v410, %v416
        %421 = vst.msk [vmem:[%s408 + $0x1] sm:$0xff] %vm360, %v419
        %422 = vst.msk [vmem:[%s408 + $0x9] sm:$0xff] %vm360, %v420
        %s423 = scalar_lea.vmem [#allocation2], 120
        %v424 = vld [vmem:[%s423 + $0x1] sm:$0xff]
        %v425 = vld [vmem:[%s423 + $0x9] sm:$0xff]
        %428 = vrot.lane.b32.xlu0 %v272, 1
        %v429 = vpop.permute.xlu0 %428
        %430 = vrot.lane.b32.xlu0 %v273, 1
        %v431 = vpop.permute.xlu0 %430
        %v434 = vadd.f32 %v424, %v429
        %v435 = vadd.f32 %v425, %v431
        %436 = vst.msk [vmem:[%s423 + $0x1] sm:$0xff] %vm360, %v434
        %437 = vst.msk [vmem:[%s423 + $0x9] sm:$0xff] %vm360, %v435
        %s438 = scalar_lea.vmem [#allocation2], 144
        %v439 = vld [vmem:[%s438 + $0x1] sm:$0xff]
        %v440 = vld [vmem:[%s438 + $0x9] sm:$0xff]
        %443 = vrot.lane.b32.xlu0 %v274, 1
        %v444 = vpop.permute.xlu0 %443
        %445 = vrot.lane.b32.xlu0 %v275, 1
        %v446 = vpop.permute.xlu0 %445
        %v449 = vadd.f32 %v439, %v444
        %v450 = vadd.f32 %v440, %v446
        %451 = vst.msk [vmem:[%s438 + $0x1] sm:$0xff] %vm360, %v449
        %452 = vst.msk [vmem:[%s438 + $0x9] sm:$0xff] %vm360, %v450
        %s453 = scalar_lea.vmem [#allocation2], 168
        %v454 = vld [vmem:[%s453 + $0x1] sm:$0xff]
        %v455 = vld [vmem:[%s453 + $0x9] sm:$0xff]
        %458 = vrot.lane.b32.xlu0 %v276, 1
        %v459 = vpop.permute.xlu0 %458
        %460 = vrot.lane.b32.xlu0 %v277, 1
        %v461 = vpop.permute.xlu0 %460
        %v464 = vadd.f32 %v454, %v459
        %v465 = vadd.f32 %v455, %v461
        %466 = vst.msk [vmem:[%s453 + $0x1] sm:$0xff] %vm360, %v464
        %467 = vst.msk [vmem:[%s453 + $0x9] sm:$0xff] %vm360, %v465
        %s468 = scalar_lea.vmem [#allocation2], 192
        %v469 = vld [vmem:[%s468 + $0x1] sm:$0xff]
        %v470 = vld [vmem:[%s468 + $0x9] sm:$0xff]
        %473 = vrot.lane.b32.xlu0 %v278, 1
        %v474 = vpop.permute.xlu0 %473
        %475 = vrot.lane.b32.xlu0 %v279, 1
        %v476 = vpop.permute.xlu0 %475
        %v479 = vadd.f32 %v469, %v474
        %v480 = vadd.f32 %v470, %v476
        %481 = vst.msk [vmem:[%s468 + $0x1] sm:$0xff] %vm360, %v479
        %482 = vst.msk [vmem:[%s468 + $0x9] sm:$0xff] %vm360, %v480
        // Predicated region
        $region52: #{tpu_custom_call.1} parent=31 // pred_check
          %p483 = pneg %p222
        $region53: #{tpu_custom_call.1} parent=31 // pred_check_branch
          %485 = sbr.rel (%p483) target = $region55
        $region54: #{tpu_custom_call.1} parent=31 // pred_region
          %s486 = sld [smem:[#allocation3]]
          %v487 = vstv %s486
          %v488 = vld [vmem:[#allocation2] sm:$0xff]
          %v489 = vld [vmem:[#allocation2 + $0x8] sm:$0xff]
          %v490 = vadd.f32 %v487, %v488
          %v491 = vadd.f32 %v487, %v489
          %v492 = vld [vmem:[%s363] sm:$0xff]
          %v493 = vld [vmem:[%s363 + $0x8] sm:$0xff]
          %496 = vrot.lane.b32.xlu0 %v492, 127
          %v497 = vpop.permute.xlu0 %496
          %498 = vrot.lane.b32.xlu0 %v493, 127
          %v499 = vpop.permute.xlu0 %498
          %v502 = vadd.f32 %v490, %v497
          %v503 = vadd.f32 %v491, %v499
          %v504 = vld [vmem:[%s378] sm:$0xff]
          %v505 = vld [vmem:[%s378 + $0x8] sm:$0xff]
          %508 = vrot.lane.b32.xlu0 %v504, 126
          %v509 = vpop.permute.xlu0 %508
          %510 = vrot.lane.b32.xlu0 %v505, 126
          %v511 = vpop.permute.xlu0 %510
          %v514 = vadd.f32 %v502, %v509
          %v515 = vadd.f32 %v503, %v511
          %v516 = vld [vmem:[%s393 + $0x1] sm:$0xff]
          %v517 = vld [vmem:[%s393 + $0x9] sm:$0xff]
          %v518 = vadd.f32 %v514, %v516
          %v519 = vadd.f32 %v515, %v517
          %v520 = vld [vmem:[%s408 + $0x1] sm:$0xff]
          %v521 = vld [vmem:[%s408 + $0x9] sm:$0xff]
          %524 = vrot.lane.b32.xlu0 %v520, 127
          %v525 = vpop.permute.xlu0 %524
          %526 = vrot.lane.b32.xlu0 %v521, 127
          %v527 = vpop.permute.xlu0 %526
          %v530 = vadd.f32 %v518, %v525
          %v531 = vadd.f32 %v519, %v527
          %v532 = vld [vmem:[%s423 + $0x1] sm:$0xff]
          %v533 = vld [vmem:[%s423 + $0x9] sm:$0xff]
          %536 = vrot.lane.b32.xlu0 %v532, 126
          %v537 = vpop.permute.xlu0 %536
          %538 = vrot.lane.b32.xlu0 %v533, 126
          %v539 = vpop.permute.xlu0 %538
          %v542 = vadd.f32 %v530, %v537
          %v543 = vadd.f32 %v531, %v539
          %v544 = vld [vmem:[%s438 + $0x2] sm:$0xff]
          %v545 = vld [vmem:[%s438 + $0xa] sm:$0xff]
          %v546 = vadd.f32 %v542, %v544
          %v547 = vadd.f32 %v543, %v545
          %v548 = vld [vmem:[%s453 + $0x2] sm:$0xff]
          %v549 = vld [vmem:[%s453 + $0xa] sm:$0xff]
          %552 = vrot.lane.b32.xlu0 %v548, 127
          %v553 = vpop.permute.xlu0 %552
          %554 = vrot.lane.b32.xlu0 %v549, 127
          %v555 = vpop.permute.xlu0 %554
          %v558 = vadd.f32 %v546, %v553
          %v559 = vadd.f32 %v547, %v555
          %v560 = vld [vmem:[%s468 + $0x2] sm:$0xff]
          %v561 = vld [vmem:[%s468 + $0xa] sm:$0xff]
          %564 = vrot.lane.b32.xlu0 %v560, 126
          %v565 = vpop.permute.xlu0 %564
          %566 = vrot.lane.b32.xlu0 %v561, 126
          %v567 = vpop.permute.xlu0 %566
          %v570 = vadd.f32 %v558, %v565
          %v571 = vadd.f32 %v559, %v567
          %vm572 = vcmask 130048
          %573 = vst.msk [vmem:[%s220] sm:$0xff] %vm572, %v570
          %574 = vst.msk [vmem:[%s220 + $0x8] sm:$0xff] %vm572, %v571
        $region55: #{tpu_custom_call.1} parent=31 // pred_fallthru
          _
        %s575 = sand.u32 %s112, 1
        %s576 = scalar_lea.sflag [#allocation6], %s575
        %s577 = sand.u32 %s112, 1
        %s578 = smul.addr %s577, 16
        %s579 = scalar_lea.vmem [#allocation9], %s578
        // Predicated region
        $region56: #{tpu_custom_call.1} parent=31 // pred_check
          %p580 = pneg %p122
        $region57: #{tpu_custom_call.1} parent=31 // pred_check_branch
          %582 = sbr.rel (%p580) target = $region59
        $region58: #{tpu_custom_call.1} parent=31 // pred_region
          %s584 = ssub.s32 256, 256
          %585 = vsyncadd %s576, %s584
          %s586 = smul.addr %s26, 2
          %s587 = smul.addr %s586, 128
          %s588 = scalar_lea.hbm %s3, %s587
          %s589 = sshll.u32 %s579, 4
          %s590 = int_to_ptr.vmem [resolvable:$true] %s589
          %595 = dma.vmem_to_hbm [thread:$0]  %s590, 256, %s588, %s576, 128, 128, 8
        $region59: #{tpu_custom_call.1} parent=31 // pred_fallthru
          _
      $region32: #{tpu_custom_call.1} parent=5 // pred_fallthru
        _
      %p596 = scmp.le.s32.totalorder 2, %s17
      // Predicated region
      $region60: #{tpu_custom_call.1} parent=5 // pred_check
        %p597 = pneg %p596
      $region61: #{tpu_custom_call.1} parent=5 // pred_check_branch
        %599 = sbr.rel (%p597) target = $region63
      $region62: #{tpu_custom_call.1} parent=5 // pred_region
        %s600 = ssub.s32 %s17, 2
        // Predicated region
        $region64: #{tpu_custom_call.1} parent=62 // pred_check
          %p601 = pneg %p128
        $region65: #{tpu_custom_call.1} parent=62 // pred_check_branch
          %603 = sbr.rel (%p601) target = $region67
        $region66: #{tpu_custom_call.1} parent=62 // pred_region
          %s604 = sand.u32 %s113, 1
          %s605 = scalar_lea.sflag [#allocation6], %s604
          %s606 = sand.u32 %s113, 1
          %s607 = smul.addr %s606, 16
          %s608 = scalar_lea.vmem [#allocation9], %s607
          %609 = dma.done %s605, 256
        $region67: #{tpu_custom_call.1} parent=62 // pred_fallthru
          _
      $region63: #{tpu_custom_call.1} parent=5 // pred_fallthru
        _
    $region6: #{tpu_custom_call.1} parent=1 // loop_footer
      %s21 = sadd.s32 1, %s17
    $region7: #{tpu_custom_call.1} parent=1 // loop_footer_branch
      %16 = sbr.rel target = $region3
    $region8: #{tpu_custom_call.1} parent=1 // loop_exit
      _
    %610 = vsyncpa [#allocation5], 1
    %s611 = scalar_lea.sflag [#allocation5], 1
    %612 = vsyncpa %s611, 1
    %613 = vsyncpa [#allocation6], 1
    %s614 = scalar_lea.sflag [#allocation6], 1
    %615 = vsyncpa %s614, 1
    %616 = vsyncpa [#allocation7], 1
    %s617 = scalar_lea.sflag [#allocation7], 1
    %618 = vsyncpa %s617, 1

</llo_original>
